<compile_context>
chip_gen: v7x
topology: tpu7x:2x2x1
jax: 0.10.0
libtpu: 0.0.40
codegen_flags: <defaults>
</compile_context>

<pallas_src>
import jax
import jax.numpy as jnp
from jax import lax
from jax.experimental import pallas as pl
from jax.experimental.pallas import tpu as pltpu


def _fused_kernel(gate_ref, x_ref, w_ref, gamma_ref, beta_ref, out_ref):
    # gate_ref : (1, C_in)      per-channel gate (pre-sigmoid)
    # x_ref    : (C_in, M)      activations, M = N*H*W  (channel-major)
    # w_ref    : (C_out, C_in)  1x1 conv weight (OI layout, no transpose)
    # gamma/beta: (C_out, 1)    batch-norm affine params
    # out_ref  : (C_out, M)
    eps = 1e-5
    m = x_ref.shape[1]
    inv_m = 1.0 / m

    # Fold the sigmoid gate into the weight columns: (w * g) @ x == w @ (g*x).
    g = jax.nn.sigmoid(gate_ref[...].astype(jnp.float32))        # (1, C_in)
    wg = w_ref[...].astype(jnp.float32) * g                      # (C_out, C_in)

    # 1x1 conv == matmul on the MXU (f32 operands, f32 accumulation).
    y = jnp.dot(wg, x_ref[...].astype(jnp.float32),
                preferred_element_type=jnp.float32)              # (C_out, M)

    # BatchNorm2d (training mode, biased variance) over the M = N*H*W axis,
    # folded into a per-channel scale/shift.  One-pass sums: f32 over 196
    # columns of O(0.3)-magnitude values -> no cancellation concern.
    sum_y = jnp.sum(y, axis=1, keepdims=True)                    # (C_out, 1)
    sum_yy = jnp.sum(y * y, axis=1, keepdims=True)               # (C_out, 1)
    mean = sum_y * inv_m
    var = sum_yy * inv_m - mean * mean
    inv_std = lax.rsqrt(var + eps)
    scale = gamma_ref[...] * inv_std                             # (C_out, 1)
    shift = beta_ref[...] - mean * scale                         # (C_out, 1)

    out_ref[...] = (y * scale + shift).astype(out_ref.dtype)


def sigmoid_mul_conv1x1_bn(x_nchw, gate_nc11, w_oihw, gamma, beta):
    """x_nchw: (1, C_in, H, W); gate_nc11: (1, C_in, 1, 1);
       w_oihw: (C_out, C_in, 1, 1); gamma/beta: (C_out,)."""
    N, C_in, H, W = x_nchw.shape
    assert N == 1, "channel-major reshape is transpose-free only for N == 1"
    C_out = w_oihw.shape[0]
    M = N * H * W

    # All reshapes below are layout-preserving (no data movement / transposes).
    x_cm = x_nchw.reshape(C_in, M)                     # (1,C,H,W) -> (C, H*W)
    gate_1c = gate_nc11.reshape(1, C_in)
    w_oc = w_oihw.reshape(C_out, C_in)                 # OIHW 1x1 -> (O, I)
    gamma_c1 = gamma.reshape(C_out, 1).astype(jnp.float32)
    beta_c1 = beta.reshape(C_out, 1).astype(jnp.float32)

    vmem_spec = pl.BlockSpec(memory_space=pltpu.MemorySpace.VMEM)
    out_cm = pl.pallas_call(
        _fused_kernel,
        out_shape=jax.ShapeDtypeStruct((C_out, M), x_nchw.dtype),
        in_specs=[vmem_spec] * 5,
        out_specs=vmem_spec,
    )(gate_1c, x_cm, w_oc, gamma_c1, beta_c1)

    # (C_out, M) -> (1, C_out, H, W): plain reshape, no transpose.
    return out_cm.reshape(N, C_out, H, W)


def _reference(x_nchw, gate_nc11, w_oihw, gamma, beta):
    eps = 1e-5
    xg = x_nchw * jax.nn.sigmoid(gate_nc11)
    y = lax.conv_general_dilated(
        xg, w_oihw, window_strides=(1, 1), padding="VALID",
        dimension_numbers=("NCHW", "OIHW", "NCHW"))
    mean = jnp.mean(y, axis=(0, 2, 3), keepdims=True)
    var = jnp.mean((y - mean) ** 2, axis=(0, 2, 3), keepdims=True)
    return (y - mean) / jnp.sqrt(var + eps) * gamma.reshape(1, -1, 1, 1) \
        + beta.reshape(1, -1, 1, 1)


if __name__ == "__main__":
    # Shapes from the module: x181 (1, 576, 14, 14), x185 (1, 576, 1, 1),
    # Conv2d(576 -> 96, 1x1, bias=False), BatchNorm2d(96).
    N, C_in, H, W, C_out = 1, 576, 14, 14, 96

    key = jax.random.PRNGKey(0)
    k_x, k_g, k_w = jax.random.split(key, 3)
    x181 = jax.random.normal(k_x, (N, C_in, H, W), dtype=jnp.float32)
    x185 = jax.random.normal(k_g, (1, C_in, 1, 1), dtype=jnp.float32)
    # Deterministic parameter init (kaiming-uniform-like scale for the conv).
    bound = 1.0 / (C_in ** 0.5)
    conv_w = jax.random.uniform(k_w, (C_out, C_in, 1, 1),
                                minval=-bound, maxval=bound, dtype=jnp.float32)
    gamma = jnp.ones((C_out,), dtype=jnp.float32)   # BatchNorm weight init
    beta = jnp.zeros((C_out,), dtype=jnp.float32)   # BatchNorm bias init

    out = sigmoid_mul_conv1x1_bn(x181, x185, conv_w, gamma, beta)
    out = jax.block_until_ready(out)

    ref = _reference(x181, x185, conv_w, gamma, beta)
    assert out.shape == (N, C_out, H, W), out.shape
    assert jnp.allclose(out, ref, atol=1e-4, rtol=1e-4), \
        float(jnp.max(jnp.abs(out - ref)))

    print("KERNEL_OK")
</pallas_src>

<mosaic_0001>
module attributes {stable_mosaic.version = 11 : i64} {
  func.func @_fused_kernel(%arg0: memref<1x576xf32, #tpu.memory_space<vmem>>, %arg1: memref<576x196xf32, #tpu.memory_space<vmem>>, %arg2: memref<96x576xf32, #tpu.memory_space<vmem>>, %arg3: memref<96x1xf32, #tpu.memory_space<vmem>>, %arg4: memref<96x1xf32, #tpu.memory_space<vmem>>, %arg5: memref<96x196xf32, #tpu.memory_space<vmem>>) attributes {dimension_semantics = [], scalar_prefetch = 0 : i64, scratch_operands = 0 : i64, tpu.core_type = #tpu.core_type<tc>} {
    %c0 = arith.constant 0 : index
    %c0_0 = arith.constant 0 : index
    %0 = vector.load %arg0[%c0, %c0_0] : memref<1x576xf32, #tpu.memory_space<vmem>>, vector<1x576xf32>
    %1 = arith.negf %0 : vector<1x576xf32>
    %2 = math.exp %1 : vector<1x576xf32>
    %cst = arith.constant 1.000000e+00 : f32
    %3 = vector.broadcast %cst : f32 to vector<1x576xf32>
    %4 = arith.addf %3, %2 : vector<1x576xf32>
    %5 = arith.divf %3, %4 : vector<1x576xf32>
    %c0_1 = arith.constant 0 : index
    %c0_2 = arith.constant 0 : index
    %6 = vector.load %arg2[%c0_1, %c0_2] : memref<96x576xf32, #tpu.memory_space<vmem>>, vector<96x576xf32>
    %7 = vector.broadcast %5 : vector<1x576xf32> to vector<96x576xf32>
    %8 = arith.mulf %6, %7 : vector<96x576xf32>
    %c0_3 = arith.constant 0 : index
    %c0_4 = arith.constant 0 : index
    %9 = vector.load %arg1[%c0_3, %c0_4] : memref<576x196xf32, #tpu.memory_space<vmem>>, vector<576x196xf32>
    %cst_5 = arith.constant dense<0.000000e+00> : vector<96x196xf32>
    %10 = tpu.matmul %8, %9, %cst_5 {dimension_numbers = #tpu.dot_dimension_numbers<[1], [0], [0], [1], [0, 0, 1, 1], [], []>} : vector<96x576xf32>, vector<576x196xf32>, vector<96x196xf32> -> vector<96x196xf32>
    %cst_6 = arith.constant dense<0.000000e+00> : vector<96xf32>
    %11 = vector.multi_reduction <add>, %10, %cst_6 [1] : vector<96x196xf32> to vector<96xf32>
    %12 = vector.shape_cast %11 : vector<96xf32> to vector<96x1xf32>
    %13 = arith.mulf %10, %10 : vector<96x196xf32>
    %cst_7 = arith.constant dense<0.000000e+00> : vector<96xf32>
    %14 = vector.multi_reduction <add>, %13, %cst_7 [1] : vector<96x196xf32> to vector<96xf32>
    %15 = vector.shape_cast %14 : vector<96xf32> to vector<96x1xf32>
    %cst_8 = arith.constant 0.00510204071 : f32
    %16 = vector.broadcast %cst_8 : f32 to vector<96x1xf32>
    %17 = arith.mulf %12, %16 : vector<96x1xf32>
    %cst_9 = arith.constant 0.00510204071 : f32
    %18 = vector.broadcast %cst_9 : f32 to vector<96x1xf32>
    %19 = arith.mulf %15, %18 : vector<96x1xf32>
    %20 = arith.mulf %17, %17 : vector<96x1xf32>
    %21 = arith.subf %19, %20 : vector<96x1xf32>
    %cst_10 = arith.constant 9.99999974E-6 : f32
    %22 = vector.broadcast %cst_10 : f32 to vector<96x1xf32>
    %23 = arith.addf %21, %22 : vector<96x1xf32>
    %24 = math.rsqrt %23 : vector<96x1xf32>
    %c0_11 = arith.constant 0 : index
    %c0_12 = arith.constant 0 : index
    %25 = vector.load %arg3[%c0_11, %c0_12] : memref<96x1xf32, #tpu.memory_space<vmem>>, vector<96x1xf32>
    %26 = arith.mulf %25, %24 : vector<96x1xf32>
    %c0_13 = arith.constant 0 : index
    %c0_14 = arith.constant 0 : index
    %27 = vector.load %arg4[%c0_13, %c0_14] : memref<96x1xf32, #tpu.memory_space<vmem>>, vector<96x1xf32>
    %28 = arith.mulf %17, %26 : vector<96x1xf32>
    %29 = arith.subf %27, %28 : vector<96x1xf32>
    %30 = vector.broadcast %26 : vector<96x1xf32> to vector<96x196xf32>
    %31 = arith.mulf %10, %30 : vector<96x196xf32>
    %32 = vector.broadcast %29 : vector<96x1xf32> to vector<96x196xf32>
    %33 = arith.addf %31, %32 : vector<96x196xf32>
    %c0_15 = arith.constant 0 : index
    %c0_16 = arith.constant 0 : index
    %34 = vector.load %arg5[%c0_15, %c0_16] : memref<96x196xf32, #tpu.memory_space<vmem>>, vector<96x196xf32>
    tpu.vector_store %arg5[%c0_15, %c0_16], %33 {strides = array<i32>} : memref<96x196xf32, #tpu.memory_space<vmem>>, vector<96x196xf32>,
    return
  }
}

</mosaic_0001>

<llo_original>
// kernel: tpu_custom_call.1
$region0: #{tpu_custom_call.1}
  #allocation0 [shape = 'u32[]', space=smem, size = 0x4, offset = 0x4, fixed_abs, tag = 'smem constant byte address 0x4 - core index']
  #allocation1 [shape = 'u32[144,128]{1,0:T(1,128)}', space=vmem, size = 0x12000, scoped, tag = 'internal scratch']
  %s0 = inlined_call_operand.vmem [shape: f32[1,576], index: 0, kind: input, shape index: {}]
  %s1 = inlined_call_operand.vmem [shape: f32[576,196], index: 1, kind: input, shape index: {}]
  %s2 = inlined_call_operand.vmem [shape: f32[96,576], index: 2, kind: input, shape index: {}]
  %s3 = inlined_call_operand.vmem [shape: f32[96,1], index: 3, kind: input, shape index: {}]
  %s4 = inlined_call_operand.vmem [shape: f32[96,1], index: 4, kind: input, shape index: {}]
  %s5 = inlined_call_operand.hbm [shape: f32[96,196], index: 5, kind: output, shape index: {}]
  %s6 = sld [smem:[#allocation0]]
  $region30: #{tpu_custom_call.1} parent=0
    _
  %s8 = ssub.s32 1, %s6
  %s9 = scalar_select 0, %s8, %s6
  $region1: #{tpu_custom_call.1} parent=0
    #allocation2 [shape = 'u8[98304]{0}', space=vmem, size = 0x18000, scoped, tag = 'output window, operand 0, single buffered']
    #allocation3 [shape = 's32[1]{0}', space=sflag, size = 0x4, scoped, tag = 'scoped memory for tpu_custom_call.1']
    %10 = vsyncpa [#allocation3], 0
    // Predicated region
    $region2: #{tpu_custom_call.1} parent=1 // pred_check
      _
    $region3: #{tpu_custom_call.1} parent=1 // pred_check_branch
      %12 = sbr.rel (0) target = $region5
    $region4: #{tpu_custom_call.1} parent=1 // pred_region
      _
    $region5: #{tpu_custom_call.1} parent=1 // pred_fallthru
      _
    // Predicated region
    $region6: #{tpu_custom_call.1} parent=1 // pred_check
      _
    $region7: #{tpu_custom_call.1} parent=1 // pred_check_branch
      %14 = sbr.rel (0) target = $region9
    $region8: #{tpu_custom_call.1} parent=1 // pred_region
      _
    $region9: #{tpu_custom_call.1} parent=1 // pred_fallthru
      _
    // Predicated region
    $region10: #{tpu_custom_call.1} parent=1 // pred_check
      _
    $region11: #{tpu_custom_call.1} parent=1 // pred_check_branch
      %16 = sbr.rel (0) target = $region13
    $region12: #{tpu_custom_call.1} parent=1 // pred_region
      _
    $region13: #{tpu_custom_call.1} parent=1 // pred_fallthru
      _
    // Predicated region
    $region14: #{tpu_custom_call.1} parent=1 // pred_check
      _
    $region15: #{tpu_custom_call.1} parent=1 // pred_check_branch
      %18 = sbr.rel (0) target = $region17
    $region16: #{tpu_custom_call.1} parent=1 // pred_region
      _
    $region17: #{tpu_custom_call.1} parent=1 // pred_fallthru
      _
    // Predicated region
    $region18: #{tpu_custom_call.1} parent=1 // pred_check
      _
    $region19: #{tpu_custom_call.1} parent=1 // pred_check_branch
      %20 = sbr.rel (0) target = $region21
    $region20: #{tpu_custom_call.1} parent=1 // pred_region
      _
    $region21: #{tpu_custom_call.1} parent=1 // pred_fallthru
      _
    %v21 = vld [vmem:[%s0] sm:$0x1f]
    %v22 = vxor.u32 %v21, 2147483648
    %v23 = vmul.f32 %v22, 1.442695
    %v24 = vpow.pop %v23
    %v25 = vadd.f32 %v24, 1.0
    %v26 = vrcp.pop %v25
    %v27 = vmul.f32 1.0, %v26
    %v28 = vld [vmem:[%s2] sm:$0xff]
    %v29 = vld [vmem:[%s2 + $0x8] sm:$0xff]
    %v30 = vld [vmem:[%s2 + $0x10] sm:$0xff]
    %v31 = vld [vmem:[%s2 + $0x18] sm:$0xff]
    %v32 = vld [vmem:[%s2 + $0x20] sm:$0xff]
    %v33 = vld [vmem:[%s2 + $0x28] sm:$0xff]
    %v34 = vld [vmem:[%s2 + $0x30] sm:$0xff]
    %v35 = vld [vmem:[%s2 + $0x38] sm:$0xff]
    %v36 = vld [vmem:[%s2 + $0x40] sm:$0xff]
    %v37 = vld [vmem:[%s2 + $0x48] sm:$0xff]
    %v38 = vld [vmem:[%s2 + $0x50] sm:$0xff]
    %v39 = vld [vmem:[%s2 + $0x58] sm:$0xff]
    %v40 = vld [vmem:[%s2 + $0x60] sm:$0xff]
    %v41 = vld [vmem:[%s2 + $0x68] sm:$0xff]
    %v42 = vld [vmem:[%s2 + $0x70] sm:$0xff]
    %v43 = vld [vmem:[%s2 + $0x78] sm:$0xff]
    %v44 = vld [vmem:[%s2 + $0x80] sm:$0xff]
    %v45 = vld [vmem:[%s2 + $0x88] sm:$0xff]
    %v46 = vld [vmem:[%s2 + $0x90] sm:$0xff]
    %v47 = vld [vmem:[%s2 + $0x98] sm:$0xff]
    %v48 = vld [vmem:[%s2 + $0xa0] sm:$0xff]
    %v49 = vld [vmem:[%s2 + $0xa8] sm:$0xff]
    %v50 = vld [vmem:[%s2 + $0xb0] sm:$0xff]
    %v51 = vld [vmem:[%s2 + $0xb8] sm:$0xff]
    %v52 = vld [vmem:[%s2 + $0xc0] sm:$0xff]
    %v53 = vld [vmem:[%s2 + $0xc8] sm:$0xff]
    %v54 = vld [vmem:[%s2 + $0xd0] sm:$0xff]
    %v55 = vld [vmem:[%s2 + $0xd8] sm:$0xff]
    %v56 = vld [vmem:[%s2 + $0xe0] sm:$0xff]
    %v57 = vld [vmem:[%s2 + $0xe8] sm:$0xff]
    %v58 = vld [vmem:[%s2 + $0xf0] sm:$0xff]
    %v59 = vld [vmem:[%s2 + $0xf8] sm:$0xff]
    %v60 = vld [vmem:[%s2 + $0x100] sm:$0xff]
    %v61 = vld [vmem:[%s2 + $0x108] sm:$0xff]
    %v62 = vld [vmem:[%s2 + $0x110] sm:$0xff]
    %v63 = vld [vmem:[%s2 + $0x118] sm:$0xff]
    %v64 = vld [vmem:[%s2 + $0x120] sm:$0xff]
    %v65 = vld [vmem:[%s2 + $0x128] sm:$0xff]
    %v66 = vld [vmem:[%s2 + $0x130] sm:$0xff]
    %v67 = vld [vmem:[%s2 + $0x138] sm:$0xff]
    %v68 = vld [vmem:[%s2 + $0x140] sm:$0xff]
    %v69 = vld [vmem:[%s2 + $0x148] sm:$0xff]
    %v70 = vld [vmem:[%s2 + $0x150] sm:$0xff]
    %v71 = vld [vmem:[%s2 + $0x158] sm:$0xff]
    %v72 = vld [vmem:[%s2 + $0x160] sm:$0xff]
    %v73 = vld [vmem:[%s2 + $0x168] sm:$0xff]
    %v74 = vld [vmem:[%s2 + $0x170] sm:$0xff]
    %v75 = vld [vmem:[%s2 + $0x178] sm:$0xff]
    %v76 = vld [vmem:[%s2 + $0x180] sm:$0xff]
    %v77 = vld [vmem:[%s2 + $0x188] sm:$0xff]
    %v78 = vld [vmem:[%s2 + $0x190] sm:$0xff]
    %v79 = vld [vmem:[%s2 + $0x198] sm:$0xff]
    %v80 = vld [vmem:[%s2 + $0x1a0] sm:$0xff]
    %v81 = vld [vmem:[%s2 + $0x1a8] sm:$0xff]
    %v82 = vld [vmem:[%s2 + $0x1b0] sm:$0xff]
    %v83 = vld [vmem:[%s2 + $0x1b8] sm:$0xff]
    %v84 = vld [vmem:[%s2 + $0x1c0] sm:$0xff]
    %v85 = vld [vmem:[%s2 + $0x1c8] sm:$0xff]
    %v86 = vld [vmem:[%s2 + $0x1d0] sm:$0xff]
    %v87 = vld [vmem:[%s2 + $0x1d8] sm:$0xff]
    %v89 = vlaneseq
    %v90 = vshrl.u32 %v89, 7
    %v91 = vsub.s32 0, %v90
    %v92 = vrot.slane %v27, %v91
    %v93 = vlaneseq
    %v94 = vshrl.u32 %v93, 7
    %v95 = vsub.s32 1, %v94
    %v96 = vrot.slane %v27, %v95
    %v97 = vlaneseq
    %v98 = vshrl.u32 %v97, 7
    %v99 = vsub.s32 2, %v98
    %v100 = vrot.slane %v27, %v99
    %v101 = vlaneseq
    %v102 = vshrl.u32 %v101, 7
    %v103 = vsub.s32 3, %v102
    %v104 = vrot.slane %v27, %v103
    %v105 = vlaneseq
    %v106 = vshrl.u32 %v105, 7
    %v107 = vsub.s32 4, %v106
    %v108 = vrot.slane %v27, %v107
    %v114 = vmul.f32 %v28, %v92
    %v115 = vmul.f32 %v29, %v96
    %v116 = vmul.f32 %v30, %v100
    %v117 = vmul.f32 %v31, %v104
    %v118 = vmul.f32 %v32, %v108
    %v119 = vmul.f32 %v33, %v92
    %v120 = vmul.f32 %v34, %v96
    %v121 = vmul.f32 %v35, %v100
    %v122 = vmul.f32 %v36, %v104
    %v123 = vmul.f32 %v37, %v108
    %v124 = vmul.f32 %v38, %v92
    %v125 = vmul.f32 %v39, %v96
    %v126 = vmul.f32 %v40, %v100
    %v127 = vmul.f32 %v41, %v104
    %v128 = vmul.f32 %v42, %v108
    %v129 = vmul.f32 %v43, %v92
    %v130 = vmul.f32 %v44, %v96
    %v131 = vmul.f32 %v45, %v100
    %v132 = vmul.f32 %v46, %v104
    %v133 = vmul.f32 %v47, %v108
    %v134 = vmul.f32 %v48, %v92
    %v135 = vmul.f32 %v49, %v96
    %v136 = vmul.f32 %v50, %v100
    %v137 = vmul.f32 %v51, %v104
    %v138 = vmul.f32 %v52, %v108
    %v139 = vmul.f32 %v53, %v92
    %v140 = vmul.f32 %v54, %v96
    %v141 = vmul.f32 %v55, %v100
    %v142 = vmul.f32 %v56, %v104
    %v143 = vmul.f32 %v57, %v108
    %v144 = vmul.f32 %v58, %v92
    %v145 = vmul.f32 %v59, %v96
    %v146 = vmul.f32 %v60, %v100
    %v147 = vmul.f32 %v61, %v104
    %v148 = vmul.f32 %v62, %v108
    %v149 = vmul.f32 %v63, %v92
    %v150 = vmul.f32 %v64, %v96
    %v151 = vmul.f32 %v65, %v100
    %v152 = vmul.f32 %v66, %v104
    %v153 = vmul.f32 %v67, %v108
    %v154 = vmul.f32 %v68, %v92
    %v155 = vmul.f32 %v69, %v96
    %v156 = vmul.f32 %v70, %v100
    %v157 = vmul.f32 %v71, %v104
    %v158 = vmul.f32 %v72, %v108
    %v159 = vmul.f32 %v73, %v92
    %v160 = vmul.f32 %v74, %v96
    %v161 = vmul.f32 %v75, %v100
    %v162 = vmul.f32 %v76, %v104
    %v163 = vmul.f32 %v77, %v108
    %v164 = vmul.f32 %v78, %v92
    %v165 = vmul.f32 %v79, %v96
    %v166 = vmul.f32 %v80, %v100
    %v167 = vmul.f32 %v81, %v104
    %v168 = vmul.f32 %v82, %v108
    %v169 = vmul.f32 %v83, %v92
    %v170 = vmul.f32 %v84, %v96
    %v171 = vmul.f32 %v85, %v100
    %v172 = vmul.f32 %v86, %v104
    %v173 = vmul.f32 %v87, %v108
    %v174 = vld [vmem:[%s1] sm:$0xff]
    %v175 = vld [vmem:[%s1 + $0x8] sm:$0xff]
    %v176 = vld [vmem:[%s1 + $0x10] sm:$0xff]
    %v177 = vld [vmem:[%s1 + $0x18] sm:$0xff]
    %v178 = vld [vmem:[%s1 + $0x20] sm:$0xff]
    %v179 = vld [vmem:[%s1 + $0x28] sm:$0xff]
    %v180 = vld [vmem:[%s1 + $0x30] sm:$0xff]
    %v181 = vld [vmem:[%s1 + $0x38] sm:$0xff]
    %v182 = vld [vmem:[%s1 + $0x40] sm:$0xff]
    %v183 = vld [vmem:[%s1 + $0x48] sm:$0xff]
    %v184 = vld [vmem:[%s1 + $0x50] sm:$0xff]
    %v185 = vld [vmem:[%s1 + $0x58] sm:$0xff]
    %v186 = vld [vmem:[%s1 + $0x60] sm:$0xff]
    %v187 = vld [vmem:[%s1 + $0x68] sm:$0xff]
    %v188 = vld [vmem:[%s1 + $0x70] sm:$0xff]
    %v189 = vld [vmem:[%s1 + $0x78] sm:$0xff]
    %v190 = vld [vmem:[%s1 + $0x80] sm:$0xff]
    %v191 = vld [vmem:[%s1 + $0x88] sm:$0xff]
    %v192 = vld [vmem:[%s1 + $0x90] sm:$0xff]
    %v193 = vld [vmem:[%s1 + $0x98] sm:$0xff]
    %v194 = vld [vmem:[%s1 + $0xa0] sm:$0xff]
    %v195 = vld [vmem:[%s1 + $0xa8] sm:$0xff]
    %v196 = vld [vmem:[%s1 + $0xb0] sm:$0xff]
    %v197 = vld [vmem:[%s1 + $0xb8] sm:$0xff]
    %v198 = vld [vmem:[%s1 + $0xc0] sm:$0xff]
    %v199 = vld [vmem:[%s1 + $0xc8] sm:$0xff]
    %v200 = vld [vmem:[%s1 + $0xd0] sm:$0xff]
    %v201 = vld [vmem:[%s1 + $0xd8] sm:$0xff]
    %v202 = vld [vmem:[%s1 + $0xe0] sm:$0xff]
    %v203 = vld [vmem:[%s1 + $0xe8] sm:$0xff]
    %v204 = vld [vmem:[%s1 + $0xf0] sm:$0xff]
    %v205 = vld [vmem:[%s1 + $0xf8] sm:$0xff]
    %v206 = vld [vmem:[%s1 + $0x100] sm:$0xff]
    %v207 = vld [vmem:[%s1 + $0x108] sm:$0xff]
    %v208 = vld [vmem:[%s1 + $0x110] sm:$0xff]
    %v209 = vld [vmem:[%s1 + $0x118] sm:$0xff]
    %v210 = vld [vmem:[%s1 + $0x120] sm:$0xff]
    %v211 = vld [vmem:[%s1 + $0x128] sm:$0xff]
    %v212 = vld [vmem:[%s1 + $0x130] sm:$0xff]
    %v213 = vld [vmem:[%s1 + $0x138] sm:$0xff]
    %v214 = vld [vmem:[%s1 + $0x140] sm:$0xff]
    %v215 = vld [vmem:[%s1 + $0x148] sm:$0xff]
    %v216 = vld [vmem:[%s1 + $0x150] sm:$0xff]
    %v217 = vld [vmem:[%s1 + $0x158] sm:$0xff]
    %v218 = vld [vmem:[%s1 + $0x160] sm:$0xff]
    %v219 = vld [vmem:[%s1 + $0x168] sm:$0xff]
    %v220 = vld [vmem:[%s1 + $0x170] sm:$0xff]
    %v221 = vld [vmem:[%s1 + $0x178] sm:$0xff]
    %v222 = vld [vmem:[%s1 + $0x180] sm:$0xff]
    %v223 = vld [vmem:[%s1 + $0x188] sm:$0xff]
    %v224 = vld [vmem:[%s1 + $0x190] sm:$0xff]
    %v225 = vld [vmem:[%s1 + $0x198] sm:$0xff]
    %v226 = vld [vmem:[%s1 + $0x1a0] sm:$0xff]
    %v227 = vld [vmem:[%s1 + $0x1a8] sm:$0xff]
    %v228 = vld [vmem:[%s1 + $0x1b0] sm:$0xff]
    %v229 = vld [vmem:[%s1 + $0x1b8] sm:$0xff]
    %v230 = vld [vmem:[%s1 + $0x1c0] sm:$0xff]
    %v231 = vld [vmem:[%s1 + $0x1c8] sm:$0xff]
    %v232 = vld [vmem:[%s1 + $0x1d0] sm:$0xff]
    %v233 = vld [vmem:[%s1 + $0x1d8] sm:$0xff]
    %v234 = vld [vmem:[%s1 + $0x1e0] sm:$0xff]
    %v235 = vld [vmem:[%s1 + $0x1e8] sm:$0xff]
    %v236 = vld [vmem:[%s1 + $0x1f0] sm:$0xff]
    %v237 = vld [vmem:[%s1 + $0x1f8] sm:$0xff]
    %v238 = vld [vmem:[%s1 + $0x200] sm:$0xff]
    %v239 = vld [vmem:[%s1 + $0x208] sm:$0xff]
    %v240 = vld [vmem:[%s1 + $0x210] sm:$0xff]
    %v241 = vld [vmem:[%s1 + $0x218] sm:$0xff]
    %v242 = vld [vmem:[%s1 + $0x220] sm:$0xff]
    %v243 = vld [vmem:[%s1 + $0x228] sm:$0xff]
    %v244 = vld [vmem:[%s1 + $0x230] sm:$0xff]
    %v245 = vld [vmem:[%s1 + $0x238] sm:$0xff]
    %v246 = vld [vmem:[%s1 + $0x240] sm:$0xff]
    %v247 = vld [vmem:[%s1 + $0x248] sm:$0xff]
    %v248 = vld [vmem:[%s1 + $0x250] sm:$0xff]
    %v249 = vld [vmem:[%s1 + $0x258] sm:$0xff]
    %v250 = vld [vmem:[%s1 + $0x260] sm:$0xff]
    %v251 = vld [vmem:[%s1 + $0x268] sm:$0xff]
    %v252 = vld [vmem:[%s1 + $0x270] sm:$0xff]
    %v253 = vld [vmem:[%s1 + $0x278] sm:$0xff]
    %v254 = vld [vmem:[%s1 + $0x280] sm:$0xff]
    %v255 = vld [vmem:[%s1 + $0x288] sm:$0xff]
    %v256 = vld [vmem:[%s1 + $0x290] sm:$0xff]
    %v257 = vld [vmem:[%s1 + $0x298] sm:$0xff]
    %v258 = vld [vmem:[%s1 + $0x2a0] sm:$0xff]
    %v259 = vld [vmem:[%s1 + $0x2a8] sm:$0xff]
    %v260 = vld [vmem:[%s1 + $0x2b0] sm:$0xff]
    %v261 = vld [vmem:[%s1 + $0x2b8] sm:$0xff]
    %v262 = vld [vmem:[%s1 + $0x2c0] sm:$0xff]
    %v263 = vld [vmem:[%s1 + $0x2c8] sm:$0xff]
    %v264 = vld [vmem:[%s1 + $0x2d0] sm:$0xff]
    %v265 = vld [vmem:[%s1 + $0x2d8] sm:$0xff]
    %v266 = vld [vmem:[%s1 + $0x2e0] sm:$0xff]
    %v267 = vld [vmem:[%s1 + $0x2e8] sm:$0xff]
    %v268 = vld [vmem:[%s1 + $0x2f0] sm:$0xff]
    %v269 = vld [vmem:[%s1 + $0x2f8] sm:$0xff]
    %v270 = vld [vmem:[%s1 + $0x300] sm:$0xff]
    %v271 = vld [vmem:[%s1 + $0x308] sm:$0xff]
    %v272 = vld [vmem:[%s1 + $0x310] sm:$0xff]
    %v273 = vld [vmem:[%s1 + $0x318] sm:$0xff]
    %v274 = vld [vmem:[%s1 + $0x320] sm:$0xff]
    %v275 = vld [vmem:[%s1 + $0x328] sm:$0xff]
    %v276 = vld [vmem:[%s1 + $0x330] sm:$0xff]
    %v277 = vld [vmem:[%s1 + $0x338] sm:$0xff]
    %v278 = vld [vmem:[%s1 + $0x340] sm:$0xff]
    %v279 = vld [vmem:[%s1 + $0x348] sm:$0xff]
    %v280 = vld [vmem:[%s1 + $0x350] sm:$0xff]
    %v281 = vld [vmem:[%s1 + $0x358] sm:$0xff]
    %v282 = vld [vmem:[%s1 + $0x360] sm:$0xff]
    %v283 = vld [vmem:[%s1 + $0x368] sm:$0xff]
    %v284 = vld [vmem:[%s1 + $0x370] sm:$0xff]
    %v285 = vld [vmem:[%s1 + $0x378] sm:$0xff]
    %v286 = vld [vmem:[%s1 + $0x380] sm:$0xff]
    %v287 = vld [vmem:[%s1 + $0x388] sm:$0xff]
    %v288 = vld [vmem:[%s1 + $0x390] sm:$0xff]
    %v289 = vld [vmem:[%s1 + $0x398] sm:$0xff]
    %v290 = vld [vmem:[%s1 + $0x3a0] sm:$0xff]
    %v291 = vld [vmem:[%s1 + $0x3a8] sm:$0xff]
    %v292 = vld [vmem:[%s1 + $0x3b0] sm:$0xff]
    %v293 = vld [vmem:[%s1 + $0x3b8] sm:$0xff]
    %v294 = vld [vmem:[%s1 + $0x3c0] sm:$0xff]
    %v295 = vld [vmem:[%s1 + $0x3c8] sm:$0xff]
    %v296 = vld [vmem:[%s1 + $0x3d0] sm:$0xff]
    %v297 = vld [vmem:[%s1 + $0x3d8] sm:$0xff]
    %v298 = vld [vmem:[%s1 + $0x3e0] sm:$0xff]
    %v299 = vld [vmem:[%s1 + $0x3e8] sm:$0xff]
    %v300 = vld [vmem:[%s1 + $0x3f0] sm:$0xff]
    %v301 = vld [vmem:[%s1 + $0x3f8] sm:$0xff]
    %v302 = vld [vmem:[%s1 + $0x400] sm:$0xff]
    %v303 = vld [vmem:[%s1 + $0x408] sm:$0xff]
    %v304 = vld [vmem:[%s1 + $0x410] sm:$0xff]
    %v305 = vld [vmem:[%s1 + $0x418] sm:$0xff]
    %v306 = vld [vmem:[%s1 + $0x420] sm:$0xff]
    %v307 = vld [vmem:[%s1 + $0x428] sm:$0xff]
    %v308 = vld [vmem:[%s1 + $0x430] sm:$0xff]
    %v309 = vld [vmem:[%s1 + $0x438] sm:$0xff]
    %v310 = vld [vmem:[%s1 + $0x440] sm:$0xff]
    %v311 = vld [vmem:[%s1 + $0x448] sm:$0xff]
    %v312 = vld [vmem:[%s1 + $0x450] sm:$0xff]
    %v313 = vld [vmem:[%s1 + $0x458] sm:$0xff]
    %v314 = vld [vmem:[%s1 + $0x460] sm:$0xff]
    %v315 = vld [vmem:[%s1 + $0x468] sm:$0xff]
    %v316 = vld [vmem:[%s1 + $0x470] sm:$0xff]
    %v317 = vld [vmem:[%s1 + $0x478] sm:$0xff]
    %vm318 = vcmask 523264
    %v320 = vsel %vm318, %v118, 0
    %v323 = vsel %vm318, %v123, 0
    %v326 = vsel %vm318, %v128, 0
    %v329 = vsel %vm318, %v133, 0
    %v332 = vsel %vm318, %v138, 0
    %v335 = vsel %vm318, %v143, 0
    %v338 = vsel %vm318, %v148, 0
    %v341 = vsel %vm318, %v153, 0
    %v344 = vsel %vm318, %v158, 0
    %v347 = vsel %vm318, %v163, 0
    %v350 = vsel %vm318, %v168, 0
    %v353 = vsel %vm318, %v173, 0
    %355 = vmatprep.subr.mxu0 %v175
    %356 = vmatpush1.msra.mxu0 %v174
    %357 = vmatprep.subr.mxu0 %v177
    %358 = vmatpush1.msra.mxu0 %v176
    %359 = vmatprep.subr.mxu0 %v179
    %360 = vmatpush1.msra.mxu0 %v178
    %361 = vmatprep.subr.mxu0 %v181
    %362 = vmatpush1.msra.mxu0 %v180
    %363 = vmatprep.subr.mxu0 %v183
    %364 = vmatpush1.msra.mxu0 %v182
    %365 = vmatprep.subr.mxu0 %v185
    %366 = vmatpush1.msra.mxu0 %v184
    %367 = vmatprep.subr.mxu0 %v187
    %368 = vmatpush1.msra.mxu0 %v186
    %369 = vmatprep.subr.mxu0 %v189
    %370 = vmatpush1.msra.mxu0 %v188
    %371 = vmatprep.subr.mxu0 %v191
    %372 = vmatpush1.msra.mxu0 %v190
    %373 = vmatprep.subr.mxu0 %v193
    %374 = vmatpush1.msra.mxu0 %v192
    %375 = vmatprep.subr.mxu0 %v195
    %376 = vmatpush1.msra.mxu0 %v194
    %377 = vmatprep.subr.mxu0 %v197
    %378 = vmatpush1.msra.mxu0 %v196
    %379 = vmatprep.subr.mxu0 %v199
    %380 = vmatpush1.msra.mxu0 %v198
    %381 = vmatprep.subr.mxu0 %v201
    %382 = vmatpush1.msra.mxu0 %v200
    %383 = vmatprep.subr.mxu0 %v203
    %384 = vmatpush1.msra.mxu0 %v202
    %385 = vmatprep.subr.mxu0 %v205
    %386 = vmatpush1.msra.mxu0 %v204
    %387 = vmatprep.subr.mxu0 %v207
    %388 = vmatpush1.msra.mxu0 %v206
    %389 = vmatprep.subr.mxu0 %v209
    %390 = vmatpush1.msra.mxu0 %v208
    %391 = vmatprep.subr.mxu0 %v211
    %392 = vmatpush1.msra.mxu0 %v210
    %393 = vmatprep.subr.mxu0 %v213
    %394 = vmatpush1.msra.mxu0 %v212
    %395 = vmatprep.subr.mxu0 %v215
    %396 = vmatpush1.msra.mxu0 %v214
    %397 = vmatprep.subr.mxu0 %v217
    %398 = vmatpush1.msra.mxu0 %v216
    %399 = vmatprep.subr.mxu0 %v219
    %400 = vmatpush1.msra.mxu0 %v218
    %401 = vmatprep.subr.mxu0 %v221
    %402 = vmatpush1.msra.mxu0 %v220
    %403 = vmatprep.subr.mxu0 %v223
    %404 = vmatpush1.msra.mxu0 %v222
    %405 = vmatprep.subr.mxu0 %v225
    %406 = vmatpush1.msra.mxu0 %v224
    %407 = vmatprep.subr.mxu0 %v227
    %408 = vmatpush1.msra.mxu0 %v226
    %409 = vmatprep.subr.mxu0 %v229
    %410 = vmatpush1.msra.mxu0 %v228
    %411 = vmatprep.subr.mxu0 %v231
    %412 = vmatpush1.msra.mxu0 %v230
    %413 = vmatprep.subr.mxu0 %v233
    %414 = vmatpush1.msra.mxu0 %v232
    %415 = vmatprep.subr.mxu0 %v235
    %416 = vmatpush1.msra.mxu0 %v234
    %417 = vmatprep.subr.mxu0 %v237
    %418 = vmatpush1.msra.mxu0 %v236
    %419 = vmatprep.mubr.f32.mxu0 %v115
    %420 = vmatmul.mubr.f32.gmra.mrb[0].mxu0 %v114
    %v421 = vpop.f32.mrb[0].mxu0
    %v422 = vadd.f32 0.0, %v421
    %v423 = vpop.f32.mrb[0].mxu0
    %v424 = vadd.f32 0.0, %v423
    %425 = vmatprep.mubr.f32.mxu0 %v120
    %426 = vmatmul.mubr.f32.gmra.mrb[0].mxu0 %v119
    %v427 = vpop.f32.mrb[0].mxu0
    %v428 = vadd.f32 0.0, %v427
    %v429 = vpop.f32.mrb[0].mxu0
    %v430 = vadd.f32 0.0, %v429
    %431 = vmatprep.mubr.f32.mxu0 %v125
    %432 = vmatmul.mubr.f32.gmra.mrb[0].mxu0 %v124
    %v433 = vpop.f32.mrb[0].mxu0
    %v434 = vadd.f32 0.0, %v433
    %v435 = vpop.f32.mrb[0].mxu0
    %v436 = vadd.f32 0.0, %v435
    %437 = vmatprep.mubr.f32.mxu0 %v130
    %438 = vmatmul.mubr.f32.gmra.mrb[0].mxu0 %v129
    %v439 = vpop.f32.mrb[0].mxu0
    %v440 = vadd.f32 0.0, %v439
    %v441 = vpop.f32.mrb[0].mxu0
    %v442 = vadd.f32 0.0, %v441
    %443 = vmatprep.mubr.f32.mxu0 %v135
    %444 = vmatmul.mubr.f32.gmra.mrb[0].mxu0 %v134
    %v445 = vpop.f32.mrb[0].mxu0
    %v446 = vadd.f32 0.0, %v445
    %v447 = vpop.f32.mrb[0].mxu0
    %v448 = vadd.f32 0.0, %v447
    %449 = vmatprep.mubr.f32.mxu0 %v140
    %450 = vmatmul.mubr.f32.gmra.mrb[0].mxu0 %v139
    %v451 = vpop.f32.mrb[0].mxu0
    %v452 = vadd.f32 0.0, %v451
    %v453 = vpop.f32.mrb[0].mxu0
    %v454 = vadd.f32 0.0, %v453
    %455 = vmatprep.mubr.f32.mxu0 %v145
    %456 = vmatmul.mubr.f32.gmra.mrb[0].mxu0 %v144
    %v457 = vpop.f32.mrb[0].mxu0
    %v458 = vadd.f32 0.0, %v457
    %v459 = vpop.f32.mrb[0].mxu0
    %v460 = vadd.f32 0.0, %v459
    %461 = vmatprep.mubr.f32.mxu0 %v150
    %462 = vmatmul.mubr.f32.gmra.mrb[0].mxu0 %v149
    %v463 = vpop.f32.mrb[0].mxu0
    %v464 = vadd.f32 0.0, %v463
    %v465 = vpop.f32.mrb[0].mxu0
    %v466 = vadd.f32 0.0, %v465
    %467 = vmatprep.mubr.f32.mxu0 %v155
    %468 = vmatmul.mubr.f32.gmra.mrb[0].mxu0 %v154
    %v469 = vpop.f32.mrb[0].mxu0
    %v470 = vadd.f32 0.0, %v469
    %v471 = vpop.f32.mrb[0].mxu0
    %v472 = vadd.f32 0.0, %v471
    %473 = vmatprep.mubr.f32.mxu0 %v160
    %474 = vmatmul.mubr.f32.gmra.mrb[0].mxu0 %v159
    %v475 = vpop.f32.mrb[0].mxu0
    %v476 = vadd.f32 0.0, %v475
    %v477 = vpop.f32.mrb[0].mxu0
    %v478 = vadd.f32 0.0, %v477
    %479 = vmatprep.mubr.f32.mxu0 %v165
    %480 = vmatmul.mubr.f32.gmra.mrb[0].mxu0 %v164
    %v481 = vpop.f32.mrb[0].mxu0
    %v482 = vadd.f32 0.0, %v481
    %v483 = vpop.f32.mrb[0].mxu0
    %v484 = vadd.f32 0.0, %v483
    %485 = vmatprep.mubr.f32.mxu0 %v170
    %486 = vmatmul.mubr.f32.gmra.mrb[0].mxu0 %v169
    %v487 = vpop.f32.mrb[0].mxu0
    %v488 = vadd.f32 0.0, %v487
    %v489 = vpop.f32.mrb[0].mxu0
    %v490 = vadd.f32 0.0, %v489
    %491 = vdwg.mxu0
    %492 = vmatprep.subr.mxu0 %v239
    %493 = vmatpush1.msra.mxu0 %v238
    %494 = vmatprep.subr.mxu0 %v241
    %495 = vmatpush1.msra.mxu0 %v240
    %496 = vmatprep.subr.mxu0 %v243
    %497 = vmatpush1.msra.mxu0 %v242
    %498 = vmatprep.subr.mxu0 %v245
    %499 = vmatpush1.msra.mxu0 %v244
    %500 = vmatprep.subr.mxu0 %v247
    %501 = vmatpush1.msra.mxu0 %v246
    %502 = vmatprep.subr.mxu0 %v249
    %503 = vmatpush1.msra.mxu0 %v248
    %504 = vmatprep.subr.mxu0 %v251
    %505 = vmatpush1.msra.mxu0 %v250
    %506 = vmatprep.subr.mxu0 %v253
    %507 = vmatpush1.msra.mxu0 %v252
    %508 = vmatprep.subr.mxu0 %v255
    %509 = vmatpush1.msra.mxu0 %v254
    %510 = vmatprep.subr.mxu0 %v257
    %511 = vmatpush1.msra.mxu0 %v256
    %512 = vmatprep.subr.mxu0 %v259
    %513 = vmatpush1.msra.mxu0 %v258
    %514 = vmatprep.subr.mxu0 %v261
    %515 = vmatpush1.msra.mxu0 %v260
    %516 = vmatprep.subr.mxu0 %v263
    %517 = vmatpush1.msra.mxu0 %v262
    %518 = vmatprep.subr.mxu0 %v265
    %519 = vmatpush1.msra.mxu0 %v264
    %520 = vmatprep.subr.mxu0 %v267
    %521 = vmatpush1.msra.mxu0 %v266
    %522 = vmatprep.subr.mxu0 %v269
    %523 = vmatpush1.msra.mxu0 %v268
    %524 = vmatprep.subr.mxu0 %v271
    %525 = vmatpush1.msra.mxu0 %v270
    %526 = vmatprep.subr.mxu0 %v273
    %527 = vmatpush1.msra.mxu0 %v272
    %528 = vmatprep.subr.mxu0 %v275
    %529 = vmatpush1.msra.mxu0 %v274
    %530 = vmatprep.subr.mxu0 %v277
    %531 = vmatpush1.msra.mxu0 %v276
    %532 = vmatprep.subr.mxu0 %v279
    %533 = vmatpush1.msra.mxu0 %v278
    %534 = vmatprep.subr.mxu0 %v281
    %535 = vmatpush1.msra.mxu0 %v280
    %536 = vmatprep.subr.mxu0 %v283
    %537 = vmatpush1.msra.mxu0 %v282
    %538 = vmatprep.subr.mxu0 %v285
    %539 = vmatpush1.msra.mxu0 %v284
    %540 = vmatprep.subr.mxu0 %v287
    %541 = vmatpush1.msra.mxu0 %v286
    %542 = vmatprep.subr.mxu0 %v289
    %543 = vmatpush1.msra.mxu0 %v288
    %544 = vmatprep.subr.mxu0 %v291
    %545 = vmatpush1.msra.mxu0 %v290
    %546 = vmatprep.subr.mxu0 %v293
    %547 = vmatpush1.msra.mxu0 %v292
    %548 = vmatprep.subr.mxu0 %v295
    %549 = vmatpush1.msra.mxu0 %v294
    %550 = vmatprep.subr.mxu0 %v297
    %551 = vmatpush1.msra.mxu0 %v296
    %552 = vmatprep.subr.mxu0 %v299
    %553 = vmatpush1.msra.mxu0 %v298
    %554 = vmatprep.subr.mxu0 %v301
    %555 = vmatpush1.msra.mxu0 %v300
    %556 = vmatprep.mubr.f32.mxu0 %v117
    %557 = vmatmul.mubr.f32.gmra.mrb[0].mxu0 %v116
    %v558 = vpop.f32.mrb[0].mxu0
    %v559 = vadd.f32 %v422, %v558
    %v560 = vpop.f32.mrb[0].mxu0
    %v561 = vadd.f32 %v424, %v560
    %562 = vmatprep.mubr.f32.mxu0 %v122
    %563 = vmatmul.mubr.f32.gmra.mrb[0].mxu0 %v121
    %v564 = vpop.f32.mrb[0].mxu0
    %v565 = vadd.f32 %v428, %v564
    %v566 = vpop.f32.mrb[0].mxu0
    %v567 = vadd.f32 %v430, %v566
    %568 = vmatprep.mubr.f32.mxu0 %v127
    %569 = vmatmul.mubr.f32.gmra.mrb[0].mxu0 %v126
    %v570 = vpop.f32.mrb[0].mxu0
    %v571 = vadd.f32 %v434, %v570
    %v572 = vpop.f32.mrb[0].mxu0
    %v573 = vadd.f32 %v436, %v572
    %574 = vmatprep.mubr.f32.mxu0 %v132
    %575 = vmatmul.mubr.f32.gmra.mrb[0].mxu0 %v131
    %v576 = vpop.f32.mrb[0].mxu0
    %v577 = vadd.f32 %v440, %v576
    %v578 = vpop.f32.mrb[0].mxu0
    %v579 = vadd.f32 %v442, %v578
    %580 = vmatprep.mubr.f32.mxu0 %v137
    %581 = vmatmul.mubr.f32.gmra.mrb[0].mxu0 %v136
    %v582 = vpop.f32.mrb[0].mxu0
    %v583 = vadd.f32 %v446, %v582
    %v584 = vpop.f32.mrb[0].mxu0
    %v585 = vadd.f32 %v448, %v584
    %586 = vmatprep.mubr.f32.mxu0 %v142
    %587 = vmatmul.mubr.f32.gmra.mrb[0].mxu0 %v141
    %v588 = vpop.f32.mrb[0].mxu0
    %v589 = vadd.f32 %v452, %v588
    %v590 = vpop.f32.mrb[0].mxu0
    %v591 = vadd.f32 %v454, %v590
    %592 = vmatprep.mubr.f32.mxu0 %v147
    %593 = vmatmul.mubr.f32.gmra.mrb[0].mxu0 %v146
    %v594 = vpop.f32.mrb[0].mxu0
    %v595 = vadd.f32 %v458, %v594
    %v596 = vpop.f32.mrb[0].mxu0
    %v597 = vadd.f32 %v460, %v596
    %598 = vmatprep.mubr.f32.mxu0 %v152
    %599 = vmatmul.mubr.f32.gmra.mrb[0].mxu0 %v151
    %v600 = vpop.f32.mrb[0].mxu0
    %v601 = vadd.f32 %v464, %v600
    %v602 = vpop.f32.mrb[0].mxu0
    %v603 = vadd.f32 %v466, %v602
    %604 = vmatprep.mubr.f32.mxu0 %v157
    %605 = vmatmul.mubr.f32.gmra.mrb[0].mxu0 %v156
    %v606 = vpop.f32.mrb[0].mxu0
    %v607 = vadd.f32 %v470, %v606
    %v608 = vpop.f32.mrb[0].mxu0
    %v609 = vadd.f32 %v472, %v608
    %610 = vmatprep.mubr.f32.mxu0 %v162
    %611 = vmatmul.mubr.f32.gmra.mrb[0].mxu0 %v161
    %v612 = vpop.f32.mrb[0].mxu0
    %v613 = vadd.f32 %v476, %v612
    %v614 = vpop.f32.mrb[0].mxu0
    %v615 = vadd.f32 %v478, %v614
    %616 = vmatprep.mubr.f32.mxu0 %v167
    %617 = vmatmul.mubr.f32.gmra.mrb[0].mxu0 %v166
    %v618 = vpop.f32.mrb[0].mxu0
    %v619 = vadd.f32 %v482, %v618
    %v620 = vpop.f32.mrb[0].mxu0
    %v621 = vadd.f32 %v484, %v620
    %622 = vmatprep.mubr.f32.mxu0 %v172
    %623 = vmatmul.mubr.f32.gmra.mrb[0].mxu0 %v171
    %v624 = vpop.f32.mrb[0].mxu0
    %v625 = vadd.f32 %v488, %v624
    %v626 = vpop.f32.mrb[0].mxu0
    %v627 = vadd.f32 %v490, %v626
    %628 = vdwg.mxu0
    %629 = vmatprep.subr.mxu0 %v303
    %630 = vmatpush1.msra.mxu0 %v302
    %631 = vmatprep.subr.mxu0 %v305
    %632 = vmatpush1.msra.mxu0 %v304
    %633 = vmatprep.subr.mxu0 %v307
    %634 = vmatpush1.msra.mxu0 %v306
    %635 = vmatprep.subr.mxu0 %v309
    %636 = vmatpush1.msra.mxu0 %v308
    %637 = vmatprep.subr.mxu0 %v311
    %638 = vmatpush1.msra.mxu0 %v310
    %639 = vmatprep.subr.mxu0 %v313
    %640 = vmatpush1.msra.mxu0 %v312
    %641 = vmatprep.subr.mxu0 %v315
    %642 = vmatpush1.msra.mxu0 %v314
    %643 = vmatprep.subr.mxu0 %v317
    %644 = vmatpush1.msra.mxu0 %v316
    %645 = vmatprep.subr.mxu0 0.0
    %646 = vmatpush1.msra.mxu0 0.0
    %647 = vmatprep.subr.mxu0 0.0
    %648 = vmatpush1.msra.mxu0 0.0
    %649 = vmatprep.subr.mxu0 0.0
    %650 = vmatpush1.msra.mxu0 0.0
    %651 = vmatprep.subr.mxu0 0.0
    %652 = vmatpush1.msra.mxu0 0.0
    %653 = vmatprep.subr.mxu0 0.0
    %654 = vmatpush1.msra.mxu0 0.0
    %655 = vmatprep.subr.mxu0 0.0
    %656 = vmatpush1.msra.mxu0 0.0
    %657 = vmatprep.subr.mxu0 0.0
    %658 = vmatpush1.msra.mxu0 0.0
    %659 = vmatprep.subr.mxu0 0.0
    %660 = vmatpush1.msra.mxu0 0.0
    %661 = vmatprep.subr.mxu0 0.0
    %662 = vmatpush1.msra.mxu0 0.0
    %663 = vmatprep.subr.mxu0 0.0
    %664 = vmatpush1.msra.mxu0 0.0
    %665 = vmatprep.subr.mxu0 0.0
    %666 = vmatpush1.msra.mxu0 0.0
    %667 = vmatprep.subr.mxu0 0.0
    %668 = vmatpush1.msra.mxu0 0.0
    %669 = vmatprep.subr.mxu0 0.0
    %670 = vmatpush1.msra.mxu0 0.0
    %671 = vmatprep.subr.mxu0 0.0
    %672 = vmatpush1.msra.mxu0 0.0
    %673 = vmatprep.subr.mxu0 0.0
    %674 = vmatpush1.msra.mxu0 0.0
    %675 = vmatprep.subr.mxu0 0.0
    %676 = vmatpush1.msra.mxu0 0.0
    %677 = vmatprep.subr.mxu0 0.0
    %678 = vmatpush1.msra.mxu0 0.0
    %679 = vmatprep.subr.mxu0 0.0
    %680 = vmatpush1.msra.mxu0 0.0
    %681 = vmatprep.subr.mxu0 0.0
    %682 = vmatpush1.msra.mxu0 0.0
    %683 = vmatprep.subr.mxu0 0.0
    %684 = vmatpush1.msra.mxu0 0.0
    %685 = vmatprep.subr.mxu0 0.0
    %686 = vmatpush1.msra.mxu0 0.0
    %687 = vmatprep.subr.mxu0 0.0
    %688 = vmatpush1.msra.mxu0 0.0
    %689 = vmatprep.subr.mxu0 0.0
    %690 = vmatpush1.msra.mxu0 0.0
    %691 = vmatprep.subr.mxu0 0.0
    %692 = vmatpush1.msra.mxu0 0.0
    %693 = vmatprep.mubr.f32.mxu0 0.0
    %694 = vmatmul.mubr.f32.gmra.mrb[0].mxu0 %v320
    %v695 = vpop.f32.mrb[0].mxu0
    %v696 = vadd.f32 %v559, %v695
    %v697 = vpop.f32.mrb[0].mxu0
    %v698 = vadd.f32 %v561, %v697
    %699 = vmatprep.mubr.f32.mxu0 0.0
    %700 = vmatmul.mubr.f32.gmra.mrb[0].mxu0 %v323
    %v701 = vpop.f32.mrb[0].mxu0
    %v702 = vadd.f32 %v565, %v701
    %v703 = vpop.f32.mrb[0].mxu0
    %v704 = vadd.f32 %v567, %v703
    %705 = vmatprep.mubr.f32.mxu0 0.0
    %706 = vmatmul.mubr.f32.gmra.mrb[0].mxu0 %v326
    %v707 = vpop.f32.mrb[0].mxu0
    %v708 = vadd.f32 %v571, %v707
    %v709 = vpop.f32.mrb[0].mxu0
    %v710 = vadd.f32 %v573, %v709
    %711 = vmatprep.mubr.f32.mxu0 0.0
    %712 = vmatmul.mubr.f32.gmra.mrb[0].mxu0 %v329
    %v713 = vpop.f32.mrb[0].mxu0
    %v714 = vadd.f32 %v577, %v713
    %v715 = vpop.f32.mrb[0].mxu0
    %v716 = vadd.f32 %v579, %v715
    %717 = vmatprep.mubr.f32.mxu0 0.0
    %718 = vmatmul.mubr.f32.gmra.mrb[0].mxu0 %v332
    %v719 = vpop.f32.mrb[0].mxu0
    %v720 = vadd.f32 %v583, %v719
    %v721 = vpop.f32.mrb[0].mxu0
    %v722 = vadd.f32 %v585, %v721
    %723 = vmatprep.mubr.f32.mxu0 0.0
    %724 = vmatmul.mubr.f32.gmra.mrb[0].mxu0 %v335
    %v725 = vpop.f32.mrb[0].mxu0
    %v726 = vadd.f32 %v589, %v725
    %v727 = vpop.f32.mrb[0].mxu0
    %v728 = vadd.f32 %v591, %v727
    %729 = vmatprep.mubr.f32.mxu0 0.0
    %730 = vmatmul.mubr.f32.gmra.mrb[0].mxu0 %v338
    %v731 = vpop.f32.mrb[0].mxu0
    %v732 = vadd.f32 %v595, %v731
    %v733 = vpop.f32.mrb[0].mxu0
    %v734 = vadd.f32 %v597, %v733
    %735 = vmatprep.mubr.f32.mxu0 0.0
    %736 = vmatmul.mubr.f32.gmra.mrb[0].mxu0 %v341
    %v737 = vpop.f32.mrb[0].mxu0
    %v738 = vadd.f32 %v601, %v737
    %v739 = vpop.f32.mrb[0].mxu0
    %v740 = vadd.f32 %v603, %v739
    %741 = vmatprep.mubr.f32.mxu0 0.0
    %742 = vmatmul.mubr.f32.gmra.mrb[0].mxu0 %v344
    %v743 = vpop.f32.mrb[0].mxu0
    %v744 = vadd.f32 %v607, %v743
    %v745 = vpop.f32.mrb[0].mxu0
    %v746 = vadd.f32 %v609, %v745
    %747 = vmatprep.mubr.f32.mxu0 0.0
    %748 = vmatmul.mubr.f32.gmra.mrb[0].mxu0 %v347
    %v749 = vpop.f32.mrb[0].mxu0
    %v750 = vadd.f32 %v613, %v749
    %v751 = vpop.f32.mrb[0].mxu0
    %v752 = vadd.f32 %v615, %v751
    %753 = vmatprep.mubr.f32.mxu0 0.0
    %754 = vmatmul.mubr.f32.gmra.mrb[0].mxu0 %v350
    %v755 = vpop.f32.mrb[0].mxu0
    %v756 = vadd.f32 %v619, %v755
    %v757 = vpop.f32.mrb[0].mxu0
    %v758 = vadd.f32 %v621, %v757
    %759 = vmatprep.mubr.f32.mxu0 0.0
    %760 = vmatmul.mubr.f32.gmra.mrb[0].mxu0 %v353
    %v761 = vpop.f32.mrb[0].mxu0
    %v762 = vadd.f32 %v625, %v761
    %v763 = vpop.f32.mrb[0].mxu0
    %v764 = vadd.f32 %v627, %v763
    %765 = vdwg.mxu0
    %vm766 = vcmask 556032
    %v767 = vsel %vm766, %v698, 0.0
    %v768 = vadd.f32 %v696, %v767
    %769 = vadd.xlane.f32.xlu0 %v768
    %v770 = vpop.xlane.xlu0 %769
    %v771 = vsel %vm766, %v704, 0.0
    %v772 = vadd.f32 %v702, %v771
    %773 = vadd.xlane.f32.xlu0 %v772
    %v774 = vpop.xlane.xlu0 %773
    %v775 = vsel %vm766, %v710, 0.0
    %v776 = vadd.f32 %v708, %v775
    %777 = vadd.xlane.f32.xlu0 %v776
    %v778 = vpop.xlane.xlu0 %777
    %v779 = vsel %vm766, %v716, 0.0
    %v780 = vadd.f32 %v714, %v779
    %781 = vadd.xlane.f32.xlu0 %v780
    %v782 = vpop.xlane.xlu0 %781
    %v783 = vsel %vm766, %v722, 0.0
    %v784 = vadd.f32 %v720, %v783
    %785 = vadd.xlane.f32.xlu0 %v784
    %v786 = vpop.xlane.xlu0 %785
    %v787 = vsel %vm766, %v728, 0.0
    %v788 = vadd.f32 %v726, %v787
    %789 = vadd.xlane.f32.xlu0 %v788
    %v790 = vpop.xlane.xlu0 %789
    %v791 = vsel %vm766, %v734, 0.0
    %v792 = vadd.f32 %v732, %v791
    %793 = vadd.xlane.f32.xlu0 %v792
    %v794 = vpop.xlane.xlu0 %793
    %v795 = vsel %vm766, %v740, 0.0
    %v796 = vadd.f32 %v738, %v795
    %797 = vadd.xlane.f32.xlu0 %v796
    %v798 = vpop.xlane.xlu0 %797
    %v799 = vsel %vm766, %v746, 0.0
    %v800 = vadd.f32 %v744, %v799
    %801 = vadd.xlane.f32.xlu0 %v800
    %v802 = vpop.xlane.xlu0 %801
    %v803 = vsel %vm766, %v752, 0.0
    %v804 = vadd.f32 %v750, %v803
    %805 = vadd.xlane.f32.xlu0 %v804
    %v806 = vpop.xlane.xlu0 %805
    %v807 = vsel %vm766, %v758, 0.0
    %v808 = vadd.f32 %v756, %v807
    %809 = vadd.xlane.f32.xlu0 %v808
    %v810 = vpop.xlane.xlu0 %809
    %v811 = vsel %vm766, %v764, 0.0
    %v812 = vadd.f32 %v762, %v811
    %813 = vadd.xlane.f32.xlu0 %v812
    %v814 = vpop.xlane.xlu0 %813
    %v815 = vmul.f32 %v696, %v696
    %v816 = vmul.f32 %v698, %v698
    %v817 = vmul.f32 %v702, %v702
    %v818 = vmul.f32 %v704, %v704
    %v819 = vmul.f32 %v708, %v708
    %v820 = vmul.f32 %v710, %v710
    %v821 = vmul.f32 %v714, %v714
    %v822 = vmul.f32 %v716, %v716
    %v823 = vmul.f32 %v720, %v720
    %v824 = vmul.f32 %v722, %v722
    %v825 = vmul.f32 %v726, %v726
    %v826 = vmul.f32 %v728, %v728
    %v827 = vmul.f32 %v732, %v732
    %v828 = vmul.f32 %v734, %v734
    %v829 = vmul.f32 %v738, %v738
    %v830 = vmul.f32 %v740, %v740
    %v831 = vmul.f32 %v744, %v744
    %v832 = vmul.f32 %v746, %v746
    %v833 = vmul.f32 %v750, %v750
    %v834 = vmul.f32 %v752, %v752
    %v835 = vmul.f32 %v756, %v756
    %v836 = vmul.f32 %v758, %v758
    %v837 = vmul.f32 %v762, %v762
    %v838 = vmul.f32 %v764, %v764
    %v839 = vsel %vm766, %v816, 0.0
    %v840 = vadd.f32 %v815, %v839
    %841 = vadd.xlane.f32.xlu0 %v840
    %v842 = vpop.xlane.xlu0 %841
    %v843 = vsel %vm766, %v818, 0.0
    %v844 = vadd.f32 %v817, %v843
    %845 = vadd.xlane.f32.xlu0 %v844
    %v846 = vpop.xlane.xlu0 %845
    %v847 = vsel %vm766, %v820, 0.0
    %v848 = vadd.f32 %v819, %v847
    %849 = vadd.xlane.f32.xlu0 %v848
    %v850 = vpop.xlane.xlu0 %849
    %v851 = vsel %vm766, %v822, 0.0
    %v852 = vadd.f32 %v821, %v851
    %853 = vadd.xlane.f32.xlu0 %v852
    %v854 = vpop.xlane.xlu0 %853
    %v855 = vsel %vm766, %v824, 0.0
    %v856 = vadd.f32 %v823, %v855
    %857 = vadd.xlane.f32.xlu0 %v856
    %v858 = vpop.xlane.xlu0 %857
    %v859 = vsel %vm766, %v826, 0.0
    %v860 = vadd.f32 %v825, %v859
    %861 = vadd.xlane.f32.xlu0 %v860
    %v862 = vpop.xlane.xlu0 %861
    %v863 = vsel %vm766, %v828, 0.0
    %v864 = vadd.f32 %v827, %v863
    %865 = vadd.xlane.f32.xlu0 %v864
    %v866 = vpop.xlane.xlu0 %865
    %v867 = vsel %vm766, %v830, 0.0
    %v868 = vadd.f32 %v829, %v867
    %869 = vadd.xlane.f32.xlu0 %v868
    %v870 = vpop.xlane.xlu0 %869
    %v871 = vsel %vm766, %v832, 0.0
    %v872 = vadd.f32 %v831, %v871
    %873 = vadd.xlane.f32.xlu0 %v872
    %v874 = vpop.xlane.xlu0 %873
    %v875 = vsel %vm766, %v834, 0.0
    %v876 = vadd.f32 %v833, %v875
    %877 = vadd.xlane.f32.xlu0 %v876
    %v878 = vpop.xlane.xlu0 %877
    %v879 = vsel %vm766, %v836, 0.0
    %v880 = vadd.f32 %v835, %v879
    %881 = vadd.xlane.f32.xlu0 %v880
    %v882 = vpop.xlane.xlu0 %881
    %v883 = vsel %vm766, %v838, 0.0
    %v884 = vadd.f32 %v837, %v883
    %885 = vadd.xlane.f32.xlu0 %v884
    %v886 = vpop.xlane.xlu0 %885
    %v887 = vmul.f32 %v770, 0.0051020407
    %v888 = vmul.f32 %v774, 0.0051020407
    %v889 = vmul.f32 %v778, 0.0051020407
    %v890 = vmul.f32 %v782, 0.0051020407
    %v891 = vmul.f32 %v786, 0.0051020407
    %v892 = vmul.f32 %v790, 0.0051020407
    %v893 = vmul.f32 %v794, 0.0051020407
    %v894 = vmul.f32 %v798, 0.0051020407
    %v895 = vmul.f32 %v802, 0.0051020407
    %v896 = vmul.f32 %v806, 0.0051020407
    %v897 = vmul.f32 %v810, 0.0051020407
    %v898 = vmul.f32 %v814, 0.0051020407
    %v899 = vmul.f32 %v842, 0.0051020407
    %v900 = vmul.f32 %v846, 0.0051020407
    %v901 = vmul.f32 %v850, 0.0051020407
    %v902 = vmul.f32 %v854, 0.0051020407
    %v903 = vmul.f32 %v858, 0.0051020407
    %v904 = vmul.f32 %v862, 0.0051020407
    %v905 = vmul.f32 %v866, 0.0051020407
    %v906 = vmul.f32 %v870, 0.0051020407
    %v907 = vmul.f32 %v874, 0.0051020407
    %v908 = vmul.f32 %v878, 0.0051020407
    %v909 = vmul.f32 %v882, 0.0051020407
    %v910 = vmul.f32 %v886, 0.0051020407
    %v911 = vmul.f32 %v887, %v887
    %v912 = vmul.f32 %v888, %v888
    %v913 = vmul.f32 %v889, %v889
    %v914 = vmul.f32 %v890, %v890
    %v915 = vmul.f32 %v891, %v891
    %v916 = vmul.f32 %v892, %v892
    %v917 = vmul.f32 %v893, %v893
    %v918 = vmul.f32 %v894, %v894
    %v919 = vmul.f32 %v895, %v895
    %v920 = vmul.f32 %v896, %v896
    %v921 = vmul.f32 %v897, %v897
    %v922 = vmul.f32 %v898, %v898
    %v923 = vsub.f32 %v899, %v911
    %v924 = vsub.f32 %v900, %v912
    %v925 = vsub.f32 %v901, %v913
    %v926 = vsub.f32 %v902, %v914
    %v927 = vsub.f32 %v903, %v915
    %v928 = vsub.f32 %v904, %v916
    %v929 = vsub.f32 %v905, %v917
    %v930 = vsub.f32 %v906, %v918
    %v931 = vsub.f32 %v907, %v919
    %v932 = vsub.f32 %v908, %v920
    %v933 = vsub.f32 %v909, %v921
    %v934 = vsub.f32 %v910, %v922
    %v935 = vadd.f32 %v923, 1e-05
    %v936 = vadd.f32 %v924, 1e-05
    %v937 = vadd.f32 %v925, 1e-05
    %v938 = vadd.f32 %v926, 1e-05
    %v939 = vadd.f32 %v927, 1e-05
    %v940 = vadd.f32 %v928, 1e-05
    %v941 = vadd.f32 %v929, 1e-05
    %v942 = vadd.f32 %v930, 1e-05
    %v943 = vadd.f32 %v931, 1e-05
    %v944 = vadd.f32 %v932, 1e-05
    %v945 = vadd.f32 %v933, 1e-05
    %v946 = vadd.f32 %v934, 1e-05
    %v947 = vrsqrt.pop %v935
    %v948 = vrsqrt.pop %v936
    %v949 = vrsqrt.pop %v937
    %v950 = vrsqrt.pop %v938
    %v951 = vrsqrt.pop %v939
    %v952 = vrsqrt.pop %v940
    %v953 = vrsqrt.pop %v941
    %v954 = vrsqrt.pop %v942
    %v955 = vrsqrt.pop %v943
    %v956 = vrsqrt.pop %v944
    %v957 = vrsqrt.pop %v945
    %v958 = vrsqrt.pop %v946
    %v959 = vld [vmem:[%s3] sm:$0xff]
    %v960 = vld [vmem:[%s3 + $0x8] sm:$0xff]
    %v961 = vld [vmem:[%s3 + $0x10] sm:$0xff]
    %v962 = vld [vmem:[%s3 + $0x18] sm:$0xff]
    %v963 = vld [vmem:[%s3 + $0x20] sm:$0xff]
    %v964 = vld [vmem:[%s3 + $0x28] sm:$0xff]
    %v965 = vld [vmem:[%s3 + $0x30] sm:$0xff]
    %v966 = vld [vmem:[%s3 + $0x38] sm:$0xff]
    %v967 = vld [vmem:[%s3 + $0x40] sm:$0xff]
    %v968 = vld [vmem:[%s3 + $0x48] sm:$0xff]
    %v969 = vld [vmem:[%s3 + $0x50] sm:$0xff]
    %v970 = vld [vmem:[%s3 + $0x58] sm:$0xff]
    %v971 = vmul.f32 %v959, %v947
    %v972 = vmul.f32 %v960, %v948
    %v973 = vmul.f32 %v961, %v949
    %v974 = vmul.f32 %v962, %v950
    %v975 = vmul.f32 %v963, %v951
    %v976 = vmul.f32 %v964, %v952
    %v977 = vmul.f32 %v965, %v953
    %v978 = vmul.f32 %v966, %v954
    %v979 = vmul.f32 %v967, %v955
    %v980 = vmul.f32 %v968, %v956
    %v981 = vmul.f32 %v969, %v957
    %v982 = vmul.f32 %v970, %v958
    %v983 = vld [vmem:[%s4] sm:$0xff]
    %v984 = vld [vmem:[%s4 + $0x8] sm:$0xff]
    %v985 = vld [vmem:[%s4 + $0x10] sm:$0xff]
    %v986 = vld [vmem:[%s4 + $0x18] sm:$0xff]
    %v987 = vld [vmem:[%s4 + $0x20] sm:$0xff]
    %v988 = vld [vmem:[%s4 + $0x28] sm:$0xff]
    %v989 = vld [vmem:[%s4 + $0x30] sm:$0xff]
    %v990 = vld [vmem:[%s4 + $0x38] sm:$0xff]
    %v991 = vld [vmem:[%s4 + $0x40] sm:$0xff]
    %v992 = vld [vmem:[%s4 + $0x48] sm:$0xff]
    %v993 = vld [vmem:[%s4 + $0x50] sm:$0xff]
    %v994 = vld [vmem:[%s4 + $0x58] sm:$0xff]
    %v995 = vmul.f32 %v887, %v971
    %v996 = vmul.f32 %v888, %v972
    %v997 = vmul.f32 %v889, %v973
    %v998 = vmul.f32 %v890, %v974
    %v999 = vmul.f32 %v891, %v975
    %v1000 = vmul.f32 %v892, %v976
    %v1001 = vmul.f32 %v893, %v977
    %v1002 = vmul.f32 %v894, %v978
    %v1003 = vmul.f32 %v895, %v979
    %v1004 = vmul.f32 %v896, %v980
    %v1005 = vmul.f32 %v897, %v981
    %v1006 = vmul.f32 %v898, %v982
    %v1007 = vsub.f32 %v983, %v995
    %v1008 = vsub.f32 %v984, %v996
    %v1009 = vsub.f32 %v985, %v997
    %v1010 = vsub.f32 %v986, %v998
    %v1011 = vsub.f32 %v987, %v999
    %v1012 = vsub.f32 %v988, %v1000
    %v1013 = vsub.f32 %v989, %v1001
    %v1014 = vsub.f32 %v990, %v1002
    %v1015 = vsub.f32 %v991, %v1003
    %v1016 = vsub.f32 %v992, %v1004
    %v1017 = vsub.f32 %v993, %v1005
    %v1018 = vsub.f32 %v994, %v1006
    %1020 = vset.pattern.permute.xlu0 0
    %1021 = vperm.xlu0 %1020, %v971
    %v1022 = vpop.permute.xlu0 %1021
    %1025 = vset.pattern.permute.xlu0 0
    %1026 = vperm.xlu0 %1025, %v972
    %v1027 = vpop.permute.xlu0 %1026
    %1030 = vset.pattern.permute.xlu0 0
    %1031 = vperm.xlu0 %1030, %v973
    %v1032 = vpop.permute.xlu0 %1031
    %1035 = vset.pattern.permute.xlu0 0
    %1036 = vperm.xlu0 %1035, %v974
    %v1037 = vpop.permute.xlu0 %1036
    %1040 = vset.pattern.permute.xlu0 0
    %1041 = vperm.xlu0 %1040, %v975
    %v1042 = vpop.permute.xlu0 %1041
    %1045 = vset.pattern.permute.xlu0 0
    %1046 = vperm.xlu0 %1045, %v976
    %v1047 = vpop.permute.xlu0 %1046
    %1050 = vset.pattern.permute.xlu0 0
    %1051 = vperm.xlu0 %1050, %v977
    %v1052 = vpop.permute.xlu0 %1051
    %1055 = vset.pattern.permute.xlu0 0
    %1056 = vperm.xlu0 %1055, %v978
    %v1057 = vpop.permute.xlu0 %1056
    %1060 = vset.pattern.permute.xlu0 0
    %1061 = vperm.xlu0 %1060, %v979
    %v1062 = vpop.permute.xlu0 %1061
    %1065 = vset.pattern.permute.xlu0 0
    %1066 = vperm.xlu0 %1065, %v980
    %v1067 = vpop.permute.xlu0 %1066
    %1070 = vset.pattern.permute.xlu0 0
    %1071 = vperm.xlu0 %1070, %v981
    %v1072 = vpop.permute.xlu0 %1071
    %1075 = vset.pattern.permute.xlu0 0
    %1076 = vperm.xlu0 %1075, %v982
    %v1077 = vpop.permute.xlu0 %1076
    %v1079 = vmul.f32 %v696, %v1022
    %v1080 = vmul.f32 %v698, %v1022
    %v1081 = vmul.f32 %v702, %v1027
    %v1082 = vmul.f32 %v704, %v1027
    %v1083 = vmul.f32 %v708, %v1032
    %v1084 = vmul.f32 %v710, %v1032
    %v1085 = vmul.f32 %v714, %v1037
    %v1086 = vmul.f32 %v716, %v1037
    %v1087 = vmul.f32 %v720, %v1042
    %v1088 = vmul.f32 %v722, %v1042
    %v1089 = vmul.f32 %v726, %v1047
    %v1090 = vmul.f32 %v728, %v1047
    %v1091 = vmul.f32 %v732, %v1052
    %v1092 = vmul.f32 %v734, %v1052
    %v1093 = vmul.f32 %v738, %v1057
    %v1094 = vmul.f32 %v740, %v1057
    %v1095 = vmul.f32 %v744, %v1062
    %v1096 = vmul.f32 %v746, %v1062
    %v1097 = vmul.f32 %v750, %v1067
    %v1098 = vmul.f32 %v752, %v1067
    %v1099 = vmul.f32 %v756, %v1072
    %v1100 = vmul.f32 %v758, %v1072
    %v1101 = vmul.f32 %v762, %v1077
    %v1102 = vmul.f32 %v764, %v1077
    %1104 = vset.pattern.permute.xlu0 0
    %1105 = vperm.xlu0 %1104, %v1007
    %v1106 = vpop.permute.xlu0 %1105
    %1109 = vset.pattern.permute.xlu0 0
    %1110 = vperm.xlu0 %1109, %v1008
    %v1111 = vpop.permute.xlu0 %1110
    %1114 = vset.pattern.permute.xlu0 0
    %1115 = vperm.xlu0 %1114, %v1009
    %v1116 = vpop.permute.xlu0 %1115
    %1119 = vset.pattern.permute.xlu0 0
    %1120 = vperm.xlu0 %1119, %v1010
    %v1121 = vpop.permute.xlu0 %1120
    %1124 = vset.pattern.permute.xlu0 0
    %1125 = vperm.xlu0 %1124, %v1011
    %v1126 = vpop.permute.xlu0 %1125
    %1129 = vset.pattern.permute.xlu0 0
    %1130 = vperm.xlu0 %1129, %v1012
    %v1131 = vpop.permute.xlu0 %1130
    %1134 = vset.pattern.permute.xlu0 0
    %1135 = vperm.xlu0 %1134, %v1013
    %v1136 = vpop.permute.xlu0 %1135
    %1139 = vset.pattern.permute.xlu0 0
    %1140 = vperm.xlu0 %1139, %v1014
    %v1141 = vpop.permute.xlu0 %1140
    %1144 = vset.pattern.permute.xlu0 0
    %1145 = vperm.xlu0 %1144, %v1015
    %v1146 = vpop.permute.xlu0 %1145
    %1149 = vset.pattern.permute.xlu0 0
    %1150 = vperm.xlu0 %1149, %v1016
    %v1151 = vpop.permute.xlu0 %1150
    %1154 = vset.pattern.permute.xlu0 0
    %1155 = vperm.xlu0 %1154, %v1017
    %v1156 = vpop.permute.xlu0 %1155
    %1159 = vset.pattern.permute.xlu0 0
    %1160 = vperm.xlu0 %1159, %v1018
    %v1161 = vpop.permute.xlu0 %1160
    %v1163 = vadd.f32 %v1079, %v1106
    %v1164 = vadd.f32 %v1080, %v1106
    %v1165 = vadd.f32 %v1081, %v1111
    %v1166 = vadd.f32 %v1082, %v1111
    %v1167 = vadd.f32 %v1083, %v1116
    %v1168 = vadd.f32 %v1084, %v1116
    %v1169 = vadd.f32 %v1085, %v1121
    %v1170 = vadd.f32 %v1086, %v1121
    %v1171 = vadd.f32 %v1087, %v1126
    %v1172 = vadd.f32 %v1088, %v1126
    %v1173 = vadd.f32 %v1089, %v1131
    %v1174 = vadd.f32 %v1090, %v1131
    %v1175 = vadd.f32 %v1091, %v1136
    %v1176 = vadd.f32 %v1092, %v1136
    %v1177 = vadd.f32 %v1093, %v1141
    %v1178 = vadd.f32 %v1094, %v1141
    %v1179 = vadd.f32 %v1095, %v1146
    %v1180 = vadd.f32 %v1096, %v1146
    %v1181 = vadd.f32 %v1097, %v1151
    %v1182 = vadd.f32 %v1098, %v1151
    %v1183 = vadd.f32 %v1099, %v1156
    %v1184 = vadd.f32 %v1100, %v1156
    %v1185 = vadd.f32 %v1101, %v1161
    %v1186 = vadd.f32 %v1102, %v1161
    %1187 = vst [vmem:[#allocation2] sm:$0xff] %v1163
    %1188 = vst.msk [vmem:[#allocation2 + $0x8] sm:$0xff] %vm766, %v1164
    %1189 = vst [vmem:[#allocation2 + $0x10] sm:$0xff] %v1165
    %1190 = vst.msk [vmem:[#allocation2 + $0x18] sm:$0xff] %vm766, %v1166
    %1191 = vst [vmem:[#allocation2 + $0x20] sm:$0xff] %v1167
    %1192 = vst.msk [vmem:[#allocation2 + $0x28] sm:$0xff] %vm766, %v1168
    %1193 = vst [vmem:[#allocation2 + $0x30] sm:$0xff] %v1169
    %1194 = vst.msk [vmem:[#allocation2 + $0x38] sm:$0xff] %vm766, %v1170
    %1195 = vst [vmem:[#allocation2 + $0x40] sm:$0xff] %v1171
    %1196 = vst.msk [vmem:[#allocation2 + $0x48] sm:$0xff] %vm766, %v1172
    %1197 = vst [vmem:[#allocation2 + $0x50] sm:$0xff] %v1173
    %1198 = vst.msk [vmem:[#allocation2 + $0x58] sm:$0xff] %vm766, %v1174
    %1199 = vst [vmem:[#allocation2 + $0x60] sm:$0xff] %v1175
    %1200 = vst.msk [vmem:[#allocation2 + $0x68] sm:$0xff] %vm766, %v1176
    %1201 = vst [vmem:[#allocation2 + $0x70] sm:$0xff] %v1177
    %1202 = vst.msk [vmem:[#allocation2 + $0x78] sm:$0xff] %vm766, %v1178
    %1203 = vst [vmem:[#allocation2 + $0x80] sm:$0xff] %v1179
    %1204 = vst.msk [vmem:[#allocation2 + $0x88] sm:$0xff] %vm766, %v1180
    %1205 = vst [vmem:[#allocation2 + $0x90] sm:$0xff] %v1181
    %1206 = vst.msk [vmem:[#allocation2 + $0x98] sm:$0xff] %vm766, %v1182
    %1207 = vst [vmem:[#allocation2 + $0xa0] sm:$0xff] %v1183
    %1208 = vst.msk [vmem:[#allocation2 + $0xa8] sm:$0xff] %vm766, %v1184
    %1209 = vst [vmem:[#allocation2 + $0xb0] sm:$0xff] %v1185
    %1210 = vst.msk [vmem:[#allocation2 + $0xb8] sm:$0xff] %vm766, %v1186
    // Predicated region
    $region22: #{tpu_custom_call.1} parent=1 // pred_check
      _
    $region23: #{tpu_custom_call.1} parent=1 // pred_check_branch
      %1212 = sbr.rel (0) target = $region25
    $region24: #{tpu_custom_call.1} parent=1 // pred_region
      %s1214 = ssub.s32 3072, 3072
      %1215 = vsyncadd [#allocation3], %s1214
      %s1216 = sshll.u32 [#allocation2], 4
      %s1217 = int_to_ptr.vmem [resolvable:$true] %s1216
      %1222 = dma.vmem_to_hbm [thread:$0]  %s1217, 3072, %s5, [#allocation3], 256, 256, 16
    $region25: #{tpu_custom_call.1} parent=1 // pred_fallthru
      _
    // Predicated region
    $region26: #{tpu_custom_call.1} parent=1 // pred_check
      _
    $region27: #{tpu_custom_call.1} parent=1 // pred_check_branch
      %1224 = sbr.rel (0) target = $region29
    $region28: #{tpu_custom_call.1} parent=1 // pred_region
      %1225 = dma.done [#allocation3], 3072
    $region29: #{tpu_custom_call.1} parent=1 // pred_fallthru
      _
    %1226 = vsyncpa [#allocation3], 1

</llo_original>
